<compile_context>
chip_gen: v7x
topology: tpu7x:2x2x1
jax: 0.10.0
libtpu: 0.0.40
codegen_flags: <defaults>
</compile_context>

<pallas_src>
import jax
import jax.numpy as jnp
from jax.experimental import pallas as pl
from jax.experimental.pallas import tpu as pltpu


def _ner_out_kernel(g_ref, m_ref, wg_ref, wm_ref, b_ref, o_ref):
    # logits = [G, M] @ W.T + b  ==  G @ W_G + M @ W_M + b
    # Inputs arrive as f32 straight from HBM; cast to the weights' compute
    # dtype (bf16) on the VPU — hidden under the streaming DMA.
    g = g_ref[...].astype(wg_ref.dtype)
    m = m_ref[...].astype(wm_ref.dtype)
    acc = jnp.dot(g, wg_ref[...], preferred_element_type=jnp.float32)
    acc = acc + jnp.dot(m, wm_ref[...], preferred_element_type=jnp.float32)
    acc = acc + b_ref[...]                    # (1, C) f32 bias broadcasts over rows
    o_ref[...] = acc.astype(o_ref.dtype)
    # TODO(synk): nn.Dropout(logits) result is discarded in the reference
    # forward, so dropout is intentionally not applied here.


def prepare_ner_out_params(W, b, dg, compute_dtype=jnp.bfloat16):
    """One-time parameter prep (hoisted off the per-call critical path).

    W: (C, 10d) Linear weight, b: (C,) bias, dg = 8d (width of G).
    Returns (wg, wm, b2): wg (8d, C), wm (2d, C) in compute_dtype, b2 (1, C) f32.
    """
    wg = jnp.asarray(W)[:, :dg].T.astype(compute_dtype)   # G occupies first 8d cols
    wm = jnp.asarray(W)[:, dg:].T.astype(compute_dtype)
    b2 = jnp.asarray(b).reshape(1, -1).astype(jnp.float32)
    return wg, wm, b2


def _pick_block_rows(rows, dg, dm, C, block_rows, vmem_limit_bytes):
    """Largest legal row tile that fits the VMEM budget."""
    if rows <= block_rows:
        return rows            # single block == full array dims -> always legal
    # Streaming f32 input tiles + f32 output tile, double-buffered by Pallas.
    per_row = 2 * 4 * (dg + dm + C)
    cap = max(8, (int(vmem_limit_bytes * 0.75) // per_row) // 8 * 8)
    return max(8, min(block_rows, cap))


def ner_out_layer(M, G, wg, wm, b2, *, block_rows=2048,
                  vmem_limit_bytes=48 * 1024 * 1024, out_dtype=None):
    """M: (B, T, 2d), G: (B, T, 8d), wg: (8d, C), wm: (2d, C), b2: (1, C)
    -> logits (B, T, C)."""
    B, T, dm = M.shape
    _, _, dg = G.shape
    assert wg.shape[0] == dg and wm.shape[0] == dm
    C = b2.shape[-1]
    out_dtype = out_dtype or M.dtype

    rows = B * T
    # Free (bitcast) reshapes; inputs stay in their native dtype -> no extra
    # HBM pass in the wrapper.
    g2 = G.reshape(rows, dg)
    m2 = M.reshape(rows, dm)

    tm = _pick_block_rows(rows, dg, dm, C, block_rows, vmem_limit_bytes)
    grid = (pl.cdiv(rows, tm),)

    out = pl.pallas_call(
        _ner_out_kernel,
        out_shape=jax.ShapeDtypeStruct((rows, C), out_dtype),
        grid_spec=pltpu.PrefetchScalarGridSpec(
            num_scalar_prefetch=0,
            grid=grid,
            in_specs=[
                # Streaming row tiles (double-buffered by Pallas).
                pl.BlockSpec((tm, dg), lambda i: (i, 0)),
                pl.BlockSpec((tm, dm), lambda i: (i, 0)),
                # Weights / bias: constant index_map -> resident in VMEM.
                pl.BlockSpec((dg, C), lambda i: (0, 0)),
                pl.BlockSpec((dm, C), lambda i: (0, 0)),
                pl.BlockSpec((1, C), lambda i: (0, 0)),
            ],
            out_specs=pl.BlockSpec((tm, C), lambda i: (i, 0)),
        ),
        compiler_params=pltpu.CompilerParams(
            dimension_semantics=("parallel",),
            vmem_limit_bytes=vmem_limit_bytes,
        ),
    )(g2, m2, wg, wm, b2)

    return out.reshape(B, T, C)


def _reference(M, G, W, b, quantize_bf16=False):
    cat = jnp.concatenate([G, M], axis=2)
    if quantize_bf16:
        cat = cat.astype(jnp.bfloat16).astype(jnp.float32)
        W = W.astype(jnp.bfloat16).astype(jnp.float32)
    return jnp.einsum("btd,cd->btc", cat, W) + b


if __name__ == "__main__":
    # Small shapes consistent with the module: d=16 -> 2d=32, 8d=128, 10d=160.
    B, T, d = 2, 8, 16
    two_d, eight_d = 2 * d, 8 * d
    input_size = two_d + eight_d          # 10d = 160
    class_num = 8                         # BIOES + PADDING + START (large_crf=False)

    key = jax.random.PRNGKey(0)
    k_m, k_g, k_w, k_b = jax.random.split(key, 4)

    M = jax.random.normal(k_m, (B, T, two_d), dtype=jnp.float32)
    G = jax.random.normal(k_g, (B, T, eight_d), dtype=jnp.float32)

    # Deterministic "init_linear"-style init (uniform +/- sqrt(6/(fan_in+fan_out))).
    bound = (6.0 / (input_size + class_num)) ** 0.5
    W = jax.random.uniform(k_w, (class_num, input_size), dtype=jnp.float32,
                           minval=-bound, maxval=bound)
    b = jnp.zeros((class_num,), dtype=jnp.float32)

    # One-time param prep (split weight, transpose, cast) hoisted out of the call.
    wg, wm, b2 = prepare_ner_out_params(W, b, dg=eight_d)

    logits = ner_out_layer(M, G, wg, wm, b2)
    jax.block_until_ready(logits)
    assert logits.shape == (B, T, class_num)

    # Tight check vs. a reference computed with the same bf16-quantized operands.
    ref_bf16 = _reference(M, G, W, b, quantize_bf16=True)
    assert jnp.allclose(logits, ref_bf16, atol=1e-2, rtol=1e-2)

    # Loose check vs. the full-f32 reference (bounded by bf16 input quantization).
    ref_f32 = _reference(M, G, W, b, quantize_bf16=False)
    assert jnp.allclose(logits, ref_f32, atol=5e-2, rtol=5e-2)

    # Exercise the ragged-row path (rows not a multiple of 8 -> full-dim block).
    B2, T2 = 3, 5
    M2 = jax.random.normal(k_b, (B2, T2, two_d), dtype=jnp.float32)
    G2 = jax.random.normal(k_b, (B2, T2, eight_d), dtype=jnp.float32)
    logits2 = ner_out_layer(M2, G2, wg, wm, b2)
    jax.block_until_ready(logits2)
    ref2 = _reference(M2, G2, W, b, quantize_bf16=False)
    assert logits2.shape == (B2, T2, class_num)
    assert jnp.allclose(logits2, ref2, atol=5e-2, rtol=5e-2)

    print("KERNEL_OK")
</pallas_src>

<mosaic_0001>
module attributes {stable_mosaic.version = 11 : i64} {
  func.func @_ner_out_kernel(%arg0: i32, %arg1: memref<16x128xf32, #tpu.memory_space<vmem>>, %arg2: memref<16x32xf32, #tpu.memory_space<vmem>>, %arg3: memref<128x8xbf16, #tpu.memory_space<vmem>>, %arg4: memref<32x8xbf16, #tpu.memory_space<vmem>>, %arg5: memref<1x8xf32, #tpu.memory_space<vmem>>, %arg6: memref<16x8xf32, #tpu.memory_space<vmem>>) attributes {dimension_semantics = [#tpu.dimension_semantics<parallel>], iteration_bounds = array<i64: 1>, scalar_prefetch = 0 : i64, scratch_operands = 0 : i64, tpu.core_type = #tpu.core_type<tc>, window_params = [{transform_indices = @transform_0, window_bounds = array<i64: 16, 128>}, {transform_indices = @transform_1, window_bounds = array<i64: 16, 32>}, {pipeline_mode = #tpu.pipeline_mode<synchronous>, transform_indices = @transform_2, window_bounds = array<i64: 128, 8>}, {pipeline_mode = #tpu.pipeline_mode<synchronous>, transform_indices = @transform_3, window_bounds = array<i64: 32, 8>}, {pipeline_mode = #tpu.pipeline_mode<synchronous>, transform_indices = @transform_4, window_bounds = array<i64: 1, 8>}, {transform_indices = @transform_5, window_bounds = array<i64: 16, 8>}]} {
    %c0 = arith.constant 0 : index
    %c0_0 = arith.constant 0 : index
    %0 = vector.load %arg1[%c0, %c0_0] : memref<16x128xf32, #tpu.memory_space<vmem>>, vector<16x128xf32>
    %1 = arith.truncf %0 : vector<16x128xf32> to vector<16x128xbf16>
    %c0_1 = arith.constant 0 : index
    %c0_2 = arith.constant 0 : index
    %2 = vector.load %arg2[%c0_1, %c0_2] : memref<16x32xf32, #tpu.memory_space<vmem>>, vector<16x32xf32>
    %3 = arith.truncf %2 : vector<16x32xf32> to vector<16x32xbf16>
    %c0_3 = arith.constant 0 : index
    %c0_4 = arith.constant 0 : index
    %4 = vector.load %arg3[%c0_3, %c0_4] : memref<128x8xbf16, #tpu.memory_space<vmem>>, vector<128x8xbf16>
    %cst = arith.constant dense<0.000000e+00> : vector<16x8xf32>
    %5 = tpu.matmul %1, %4, %cst {dimension_numbers = #tpu.dot_dimension_numbers<[1], [0], [0], [1], [0, 0, 1, 1], [], []>} : vector<16x128xbf16>, vector<128x8xbf16>, vector<16x8xf32> -> vector<16x8xf32>
    %c0_5 = arith.constant 0 : index
    %c0_6 = arith.constant 0 : index
    %6 = vector.load %arg4[%c0_5, %c0_6] : memref<32x8xbf16, #tpu.memory_space<vmem>>, vector<32x8xbf16>
    %cst_7 = arith.constant dense<0.000000e+00> : vector<16x8xf32>
    %7 = tpu.matmul %3, %6, %cst_7 {dimension_numbers = #tpu.dot_dimension_numbers<[1], [0], [0], [1], [0, 0, 1, 1], [], []>} : vector<16x32xbf16>, vector<32x8xbf16>, vector<16x8xf32> -> vector<16x8xf32>
    %8 = arith.addf %5, %7 : vector<16x8xf32>
    %c0_8 = arith.constant 0 : index
    %c0_9 = arith.constant 0 : index
    %9 = vector.load %arg5[%c0_8, %c0_9] : memref<1x8xf32, #tpu.memory_space<vmem>>, vector<1x8xf32>
    %10 = vector.broadcast %9 : vector<1x8xf32> to vector<16x8xf32>
    %11 = arith.addf %8, %10 : vector<16x8xf32>
    %c0_10 = arith.constant 0 : index
    %c0_11 = arith.constant 0 : index
    %12 = vector.load %arg6[%c0_10, %c0_11] : memref<16x8xf32, #tpu.memory_space<vmem>>, vector<16x8xf32>
    tpu.vector_store %arg6[%c0_10, %c0_11], %11 {strides = array<i32>} : memref<16x8xf32, #tpu.memory_space<vmem>>, vector<16x8xf32>,
    return
  }
  func.func @transform_0(%arg0: i32) -> (i32, i32) {
    %c0_i32 = arith.constant 0 : i32
    %c0_i32_0 = arith.constant 0 : i32
    return %arg0, %c0_i32 : i32, i32
  }
  func.func @transform_1(%arg0: i32) -> (i32, i32) {
    %c0_i32 = arith.constant 0 : i32
    %c0_i32_0 = arith.constant 0 : i32
    return %arg0, %c0_i32 : i32, i32
  }
  func.func @transform_2(%arg0: i32) -> (i32, i32) {
    %c0_i32 = arith.constant 0 : i32
    %c0_i32_0 = arith.constant 0 : i32
    %c0_i32_1 = arith.constant 0 : i32
    return %c0_i32, %c0_i32_0 : i32, i32
  }
  func.func @transform_3(%arg0: i32) -> (i32, i32) {
    %c0_i32 = arith.constant 0 : i32
    %c0_i32_0 = arith.constant 0 : i32
    %c0_i32_1 = arith.constant 0 : i32
    return %c0_i32, %c0_i32_0 : i32, i32
  }
  func.func @transform_4(%arg0: i32) -> (i32, i32) {
    %c0_i32 = arith.constant 0 : i32
    %c0_i32_0 = arith.constant 0 : i32
    %c0_i32_1 = arith.constant 0 : i32
    return %c0_i32, %c0_i32_0 : i32, i32
  }
  func.func @transform_5(%arg0: i32) -> (i32, i32) {
    %c0_i32 = arith.constant 0 : i32
    %c0_i32_0 = arith.constant 0 : i32
    return %arg0, %c0_i32 : i32, i32
  }
}

</mosaic_0001>

<llo_original>
// kernel: tpu_custom_call.1
$region0: #{tpu_custom_call.1}
  #allocation0 [shape = 'u32[]', space=smem, size = 0x4, offset = 0x4, fixed_abs, tag = 'smem constant byte address 0x4 - core index']
  #allocation1 [shape = 'u32[144,128]{1,0:T(1,128)}', space=vmem, size = 0x12000, scoped, tag = 'internal scratch']
  %s0 = inlined_call_operand.vmem [shape: f32[16,128], index: 0, kind: input, shape index: {}]
  %s1 = inlined_call_operand.vmem [shape: f32[16,32], index: 1, kind: input, shape index: {}]
  %s2 = inlined_call_operand.vmem [shape: bf16[128,8], index: 2, kind: input, shape index: {}]
  %s3 = inlined_call_operand.vmem [shape: bf16[32,8], index: 3, kind: input, shape index: {}]
  %s4 = inlined_call_operand.vmem [shape: f32[1,8], index: 4, kind: input, shape index: {}]
  %s5 = inlined_call_operand.vmem [shape: f32[16,8], index: 5, kind: output, shape index: {}]
  %s6 = sld [smem:[#allocation0]]
  $region30: #{tpu_custom_call.1} parent=0
    _
  %s8 = ssub.s32 1, %s6
  %s9 = scalar_select 0, %s8, %s6
  // Predicated region
  $region2: #{tpu_custom_call.1} parent=0 // pred_check
    _
  $region3: #{tpu_custom_call.1} parent=0 // pred_check_branch
    %11 = sbr.rel (0) target = $region5
  $region4: #{tpu_custom_call.1} parent=0 // pred_region
    _
  $region5: #{tpu_custom_call.1} parent=0 // pred_fallthru
    _
  // Predicated region
  $region6: #{tpu_custom_call.1} parent=0 // pred_check
    _
  $region7: #{tpu_custom_call.1} parent=0 // pred_check_branch
    %13 = sbr.rel (0) target = $region9
  $region8: #{tpu_custom_call.1} parent=0 // pred_region
    _
  $region9: #{tpu_custom_call.1} parent=0 // pred_fallthru
    _
  // Predicated region
  $region10: #{tpu_custom_call.1} parent=0 // pred_check
    _
  $region11: #{tpu_custom_call.1} parent=0 // pred_check_branch
    %15 = sbr.rel (0) target = $region13
  $region12: #{tpu_custom_call.1} parent=0 // pred_region
    _
  $region13: #{tpu_custom_call.1} parent=0 // pred_fallthru
    _
  // Predicated region
  $region14: #{tpu_custom_call.1} parent=0 // pred_check
    _
  $region15: #{tpu_custom_call.1} parent=0 // pred_check_branch
    %17 = sbr.rel (0) target = $region17
  $region16: #{tpu_custom_call.1} parent=0 // pred_region
    _
  $region17: #{tpu_custom_call.1} parent=0 // pred_fallthru
    _
  // Predicated region
  $region18: #{tpu_custom_call.1} parent=0 // pred_check
    _
  $region19: #{tpu_custom_call.1} parent=0 // pred_check_branch
    %19 = sbr.rel (0) target = $region21
  $region20: #{tpu_custom_call.1} parent=0 // pred_region
    _
  $region21: #{tpu_custom_call.1} parent=0 // pred_fallthru
    _
  %v21 = vld [vmem:[%s0] sm:$0xff]
  %v22 = vld [vmem:[%s0 + $0x8] sm:$0xff]
  %v23 = vpack.c.bf16 %v22, %v21
  %v24 = vld [vmem:[%s1] sm:$0xff]
  %v25 = vld [vmem:[%s1 + $0x8] sm:$0xff]
  %v26 = vpack.c.bf16 %v25, %v24
  %v27 = vld [vmem:[%s2] sm:$0xf]
  %v28 = vld [vmem:[%s2 + $0x4] sm:$0xf]
  %v29 = vld [vmem:[%s2 + $0x8] sm:$0xf]
  %v30 = vld [vmem:[%s2 + $0xc] sm:$0xf]
  %v31 = vld [vmem:[%s2 + $0x10] sm:$0xf]
  %v32 = vld [vmem:[%s2 + $0x14] sm:$0xf]
  %v33 = vld [vmem:[%s2 + $0x18] sm:$0xf]
  %v34 = vld [vmem:[%s2 + $0x1c] sm:$0xf]
  %v35 = vld [vmem:[%s2 + $0x20] sm:$0xf]
  %v36 = vld [vmem:[%s2 + $0x24] sm:$0xf]
  %v37 = vld [vmem:[%s2 + $0x28] sm:$0xf]
  %v38 = vld [vmem:[%s2 + $0x2c] sm:$0xf]
  %v39 = vld [vmem:[%s2 + $0x30] sm:$0xf]
  %v40 = vld [vmem:[%s2 + $0x34] sm:$0xf]
  %v41 = vld [vmem:[%s2 + $0x38] sm:$0xf]
  %v42 = vld [vmem:[%s2 + $0x3c] sm:$0xf]
  %v43 = vld [vmem:[%s3] sm:$0xf]
  %v44 = vld [vmem:[%s3 + $0x4] sm:$0xf]
  %v45 = vld [vmem:[%s3 + $0x8] sm:$0xf]
  %v46 = vld [vmem:[%s3 + $0xc] sm:$0xf]
  %v51 = vunpack.c.l.b16 %v43
  %v52 = vunpack.c.l.b16 %v44
  %v53 = vunpack.c.l.b16 %v45
  %v54 = vunpack.c.l.b16 %v46
  %v55 = vpack.c.b16 %v52, %v51
  %v56 = vpack.c.b16 %v54, %v53
  %vm59 = vcmask 261120
  %v61 = vsel %vm59, %v26, 0
  %63 = vmatprep.subr.bf16.mxu0 0
  %64 = vmatpush1.bf16.msra.mxu0 %v55
  %65 = vmatprep.subr.bf16.mxu0 0
  %66 = vmatpush1.bf16.msra.mxu0 %v56
  %67 = vmatprep.subr.bf16.mxu0 0
  %68 = vmatpush1.bf16.msra.mxu0 0
  %69 = vmatprep.subr.bf16.mxu0 0
  %70 = vmatpush1.bf16.msra.mxu0 0
  %71 = vmatprep.subr.bf16.mxu0 0
  %72 = vmatpush1.bf16.msra.mxu0 0
  %73 = vmatprep.subr.bf16.mxu0 0
  %74 = vmatpush1.bf16.msra.mxu0 0
  %75 = vmatprep.subr.bf16.mxu0 0
  %76 = vmatpush1.bf16.msra.mxu0 0
  %77 = vmatprep.subr.bf16.mxu0 0
  %78 = vmatpush1.bf16.msra.mxu0 0
  %79 = vmatprep.subr.bf16.mxu0 0
  %80 = vmatpush1.bf16.msra.mxu0 0
  %81 = vmatprep.subr.bf16.mxu0 0
  %82 = vmatpush1.bf16.msra.mxu0 0
  %83 = vmatprep.subr.bf16.mxu0 0
  %84 = vmatpush1.bf16.msra.mxu0 0
  %85 = vmatprep.subr.bf16.mxu0 0
  %86 = vmatpush1.bf16.msra.mxu0 0
  %87 = vmatprep.subr.bf16.mxu0 0
  %88 = vmatpush1.bf16.msra.mxu0 0
  %89 = vmatprep.subr.bf16.mxu0 0
  %90 = vmatpush1.bf16.msra.mxu0 0
  %91 = vmatprep.subr.bf16.mxu0 0
  %92 = vmatpush1.bf16.msra.mxu0 0
  %93 = vmatprep.subr.bf16.mxu0 0
  %94 = vmatpush1.bf16.msra.mxu0 0
  %95 = vmatprep.mubr.bf16.mxu0 0
  %96 = vmatmul.mubr.bf16.gmra.mrb[0].mxu0 %v61
  %v97 = vpop.f32.mrb[0].mxu0
  %v98 = vadd.f32 0.0, %v97
  %v99 = vpop.f32.mrb[0].mxu0
  %v100 = vpop.f32.mrb[0].mxu0
  %v101 = vadd.f32 0.0, %v100
  %v102 = vpop.f32.mrb[0].mxu0
  %103 = vdwg.mxu0
  %v120 = vunpack.c.l.b16 %v27
  %v121 = vunpack.c.l.b16 %v28
  %v122 = vunpack.c.l.b16 %v29
  %v123 = vunpack.c.l.b16 %v30
  %v124 = vunpack.c.l.b16 %v31
  %v125 = vunpack.c.l.b16 %v32
  %v126 = vunpack.c.l.b16 %v33
  %v127 = vunpack.c.l.b16 %v34
  %v128 = vunpack.c.l.b16 %v35
  %v129 = vunpack.c.l.b16 %v36
  %v130 = vunpack.c.l.b16 %v37
  %v131 = vunpack.c.l.b16 %v38
  %v132 = vunpack.c.l.b16 %v39
  %v133 = vunpack.c.l.b16 %v40
  %v134 = vunpack.c.l.b16 %v41
  %v135 = vunpack.c.l.b16 %v42
  %v136 = vpack.c.b16 %v121, %v120
  %v137 = vpack.c.b16 %v123, %v122
  %v138 = vpack.c.b16 %v125, %v124
  %v139 = vpack.c.b16 %v127, %v126
  %v140 = vpack.c.b16 %v129, %v128
  %v141 = vpack.c.b16 %v131, %v130
  %v142 = vpack.c.b16 %v133, %v132
  %v143 = vpack.c.b16 %v135, %v134
  %152 = vmatprep.subr.bf16.mxu0 0
  %153 = vmatpush1.bf16.msra.mxu0 %v136
  %154 = vmatprep.subr.bf16.mxu0 0
  %155 = vmatpush1.bf16.msra.mxu0 %v137
  %156 = vmatprep.subr.bf16.mxu0 0
  %157 = vmatpush1.bf16.msra.mxu0 %v138
  %158 = vmatprep.subr.bf16.mxu0 0
  %159 = vmatpush1.bf16.msra.mxu0 %v139
  %160 = vmatprep.subr.bf16.mxu0 0
  %161 = vmatpush1.bf16.msra.mxu0 %v140
  %162 = vmatprep.subr.bf16.mxu0 0
  %163 = vmatpush1.bf16.msra.mxu0 %v141
  %164 = vmatprep.subr.bf16.mxu0 0
  %165 = vmatpush1.bf16.msra.mxu0 %v142
  %166 = vmatprep.subr.bf16.mxu0 0
  %167 = vmatpush1.bf16.msra.mxu0 %v143
  %168 = vmatprep.subr.bf16.mxu0 0
  %169 = vmatpush1.bf16.msra.mxu0 0
  %170 = vmatprep.subr.bf16.mxu0 0
  %171 = vmatpush1.bf16.msra.mxu0 0
  %172 = vmatprep.subr.bf16.mxu0 0
  %173 = vmatpush1.bf16.msra.mxu0 0
  %174 = vmatprep.subr.bf16.mxu0 0
  %175 = vmatpush1.bf16.msra.mxu0 0
  %176 = vmatprep.subr.bf16.mxu0 0
  %177 = vmatpush1.bf16.msra.mxu0 0
  %178 = vmatprep.subr.bf16.mxu0 0
  %179 = vmatpush1.bf16.msra.mxu0 0
  %180 = vmatprep.subr.bf16.mxu0 0
  %181 = vmatpush1.bf16.msra.mxu0 0
  %182 = vmatprep.subr.bf16.mxu0 0
  %183 = vmatpush1.bf16.msra.mxu0 0
  %184 = vmatprep.mubr.bf16.mxu0 0
  %185 = vmatmul.mubr.bf16.gmra.mrb[0].mxu0 %v23
  %v186 = vpop.f32.mrb[0].mxu0
  %v187 = vadd.f32 %v98, %v186
  %v188 = vpop.f32.mrb[0].mxu0
  %v189 = vpop.f32.mrb[0].mxu0
  %v190 = vadd.f32 %v101, %v189
  %v191 = vpop.f32.mrb[0].mxu0
  %192 = vdwg.mxu0
  %v193 = vld [vmem:[%s4] sm:$0x1]
  %v195 = vlaneseq
  %v196 = vshrl.u32 %v195, 7
  %v197 = vsub.s32 0, %v196
  %v198 = vrot.slane %v193, %v197
  %v200 = vadd.f32 %v187, %v198
  %v201 = vadd.f32 %v190, %v198
  %vm202 = vcmask 64512
  %203 = vst.msk [vmem:[%s5] sm:$0xff] %vm202, %v200
  %204 = vst.msk [vmem:[%s5 + $0x8] sm:$0xff] %vm202, %v201
  // Predicated region
  $region22: #{tpu_custom_call.1} parent=0 // pred_check
    _
  $region23: #{tpu_custom_call.1} parent=0 // pred_check_branch
    %206 = sbr.rel (0) target = $region25
  $region24: #{tpu_custom_call.1} parent=0 // pred_region
    _
  $region25: #{tpu_custom_call.1} parent=0 // pred_fallthru
    _
  // Predicated region
  $region26: #{tpu_custom_call.1} parent=0 // pred_check
    _
  $region27: #{tpu_custom_call.1} parent=0 // pred_check_branch
    %208 = sbr.rel (0) target = $region29
  $region28: #{tpu_custom_call.1} parent=0 // pred_region
    _
  $region29: #{tpu_custom_call.1} parent=0 // pred_fallthru
    _

</llo_original>
